<compile_context>
chip_gen: v5e
topology: v5e:2x2
jax: 0.10.0
libtpu: 0.0.40
codegen_flags: <defaults>
</compile_context>

<pallas_src>
import jax
import jax.numpy as jnp
from jax.experimental import pallas as pl
from jax.experimental.pallas import tpu as pltpu  # noqa: F401  (TPU backend)


# ----------------------------- config (small) -------------------------------
VOCAB_SIZE = 20
EMBED_DIM = 8            # args.embed_dim
HIDDEN_SIZE = 32         # args.hidden_size   (LSTM hidden is hidden_size // 2)
H_HALF = HIDDEN_SIZE // 2
SNLI_H_DIM = 32          # args.snli_h_dim
N_CLASSES = 3
SEQ_LEN = 8
BATCH = 2
PAD_IDX = 0
LN_EPS = 1e-6
D_IN = 4 * HIDDEN_SIZE   # 128  (prepare_features width, also head_vecs lane width)


# ------------------------------- kernel --------------------------------------
def _layer_norm(x, a, b):
    """Custom LayerNormalization: (x - mu) / (std_unbiased + eps) * a + b.

    Kept exact (unbiased (n-1) variance, eps added to the std, exact divide)
    to match the PyTorch reference; the 3 head LayerNorms are tiny.
    """
    n = x.shape[1]
    mu = jnp.mean(x, axis=1, keepdims=True)
    d = x - mu
    var = jnp.sum(d * d, axis=1, keepdims=True) * (1.0 / (n - 1))
    return d / (jnp.sqrt(var) + LN_EPS) * a + b


def _snli_fused_kernel(x_ref,          # (T*4B, E)      time-major stacked embeddings
                       lstm_w_ref,     # (E + H, 4H)    rows 0:E = W_ih^T, rows E: = W_hh^T
                       head_mats_ref,  # (D_IN+2*SH, SH) [w1^T ; w2^T ; w_out^T (lane-padded)]
                       head_vecs_ref,  # (10, 128)      LN params / biases / LSTM bias
                       out_ref):       # (B, 3)
    T = SEQ_LEN
    B = BATCH
    nB = 4 * B                         # [hyp fwd, prem fwd, hyp bwd, prem bwd]
    H = H_HALF
    H3 = 3 * H
    H4 = 4 * H

    # ---- LSTM weights (gate columns packed as i | f | o | g) ----
    w_ih = lstm_w_ref[0:EMBED_DIM, :]                     # (E, 4H)
    w_hh = lstm_w_ref[EMBED_DIM:EMBED_DIM + H, :]         # (H, 4H)
    lstm_b = head_vecs_ref[2:3, 0:H4]                     # (1, 4H)

    # ---- hoisted input projection for all timesteps / runs (off serial chain) ----
    xp = jnp.dot(x_ref[...], w_ih,
                 preferred_element_type=jnp.float32) + lstm_b      # (T*nB, 4H)

    # ---- LSTM recurrence, fully unrolled (T static) ----
    h = jnp.zeros((nB, H), jnp.float32)
    c = jnp.zeros((nB, H), jnp.float32)
    for t in range(T):
        gates = xp[t * nB:(t + 1) * nB, :] + jnp.dot(
            h, w_hh, preferred_element_type=jnp.float32)           # (nB, 4H)
        sig = jax.nn.sigmoid(gates[:, 0:H3])                       # i | f | o  (1 EUP block)
        g_g = jnp.tanh(gates[:, H3:H4])                            # g
        i_g = sig[:, 0:H]
        f_g = sig[:, H:2 * H]
        o_g = sig[:, 2 * H:H3]
        c = f_g * c + i_g * g_g
        h = o_g * jnp.tanh(c)

    # ---- encode_sent summaries: concat final forward / backward hidden states ----
    hyp_enc = jnp.concatenate([h[0 * B:1 * B], h[2 * B:3 * B]], axis=1)    # (B, 2H)
    prem_enc = jnp.concatenate([h[1 * B:2 * B], h[3 * B:4 * B]], axis=1)   # (B, 2H)

    # ---- MLP classifier head ----
    # prepare_features: [hyp, prem, prem - hyp, hyp * prem] along features
    feats = jnp.concatenate(
        [hyp_enc, prem_enc, prem_enc - hyp_enc, hyp_enc * prem_enc], axis=1)  # (B, 128)
    feats = _layer_norm(feats, head_vecs_ref[0:1, :], head_vecs_ref[1:2, :])
    # dropout is identity in eval mode

    w1 = head_mats_ref[0:D_IN, :]                                         # (128, 32)
    w2 = head_mats_ref[D_IN:D_IN + SNLI_H_DIM, :]                         # (32, 32)
    w_out = head_mats_ref[D_IN + SNLI_H_DIM:D_IN + 2 * SNLI_H_DIM,
                          0:N_CLASSES]                                    # (32, 3)

    h1 = jnp.dot(feats, w1, preferred_element_type=jnp.float32) \
        + head_vecs_ref[3:4, 0:SNLI_H_DIM]
    h1 = _layer_norm(jnp.maximum(h1, 0.0),
                     head_vecs_ref[4:5, 0:SNLI_H_DIM],
                     head_vecs_ref[5:6, 0:SNLI_H_DIM])

    h2 = jnp.dot(h1, w2, preferred_element_type=jnp.float32) \
        + head_vecs_ref[6:7, 0:SNLI_H_DIM]
    h2 = _layer_norm(jnp.maximum(h2, 0.0),
                     head_vecs_ref[7:8, 0:SNLI_H_DIM],
                     head_vecs_ref[8:9, 0:SNLI_H_DIM])

    out_ref[...] = (jnp.dot(h2, w_out, preferred_element_type=jnp.float32)
                    + head_vecs_ref[9:10, 0:N_CLASSES])


# ============================== parameter init ===============================
def init_params(key):
    ks = jax.random.split(key, 8)
    f32 = jnp.float32

    embed = jax.random.normal(ks[0], (VOCAB_SIZE, EMBED_DIM), f32) * 0.1
    embed = embed.at[PAD_IDX].set(0.0)               # padding_idx row is zero

    # nn.LSTM(input_size=EMBED_DIM, hidden_size=H_HALF) — generated in PyTorch
    # layout (rows stacked i, f, g, o), then packed once into kernel layout
    # (columns grouped per gate in i | f | o | g order).
    lstm_scale = 1.0 / jnp.sqrt(jnp.asarray(H_HALF, f32))
    w_ih = jax.random.uniform(ks[1], (4 * H_HALF, EMBED_DIM), f32, -1, 1) * lstm_scale
    w_hh = jax.random.uniform(ks[2], (4 * H_HALF, H_HALF), f32, -1, 1) * lstm_scale
    b_ih = jax.random.uniform(ks[3], (4 * H_HALF,), f32, -1, 1) * lstm_scale
    b_hh = jax.random.uniform(ks[4], (4 * H_HALF,), f32, -1, 1) * lstm_scale
    lstm_bias = b_ih + b_hh

    def gate_rows(w, k):                             # gate k in PyTorch (i,f,g,o) order
        return w[k * H_HALF:(k + 1) * H_HALF]

    order = (0, 1, 3, 2)                             # repack as i, f, o, g
    w_ih_packed = jnp.concatenate([gate_rows(w_ih, k).T for k in order], axis=1)  # (E, 4H)
    w_hh_packed = jnp.concatenate([gate_rows(w_hh, k).T for k in order], axis=1)  # (H, 4H)
    b_packed = jnp.concatenate(
        [lstm_bias[k * H_HALF:(k + 1) * H_HALF] for k in order])                  # (4H,)
    lstm_w = jnp.concatenate([w_ih_packed, w_hh_packed], axis=0)                  # (E+H, 4H)

    def he(k, shape):                                # HeKaimingInitializer (out, in)
        fan_in = shape[1]
        return jax.random.normal(k, shape, f32) * jnp.sqrt(2.0 / fan_in)

    w1 = he(ks[5], (SNLI_H_DIM, D_IN))
    w2 = he(ks[6], (SNLI_H_DIM, SNLI_H_DIM))
    w_out = he(ks[7], (N_CLASSES, SNLI_H_DIM))

    # head_mats: [w1^T ; w2^T ; w_out^T lane-padded to SNLI_H_DIM]  -> (192, 32)
    w_out_t_pad = jnp.zeros((SNLI_H_DIM, SNLI_H_DIM), f32).at[:, :N_CLASSES].set(w_out.T)
    head_mats = jnp.concatenate([w1.T, w2.T, w_out_t_pad], axis=0)

    # head_vecs (10, 128): every tiny vector parameter, lane-padded to 128.
    # rows: 0 ln0_a, 1 ln0_b, 2 lstm_bias, 3 b1, 4 ln1_a, 5 ln1_b, 6 b2,
    #       7 ln2_a, 8 ln2_b, 9 b_out
    def row(v):
        return jnp.zeros((D_IN,), f32).at[:v.shape[0]].set(v)

    head_vecs = jnp.stack([
        jnp.ones((D_IN,), f32),                  # ln0_a
        jnp.zeros((D_IN,), f32),                 # ln0_b
        row(b_packed),                           # LSTM bias (lanes 0:64)
        row(jnp.zeros((SNLI_H_DIM,), f32)),      # b1
        row(jnp.ones((SNLI_H_DIM,), f32)),       # ln1_a
        row(jnp.zeros((SNLI_H_DIM,), f32)),      # ln1_b
        row(jnp.zeros((SNLI_H_DIM,), f32)),      # b2
        row(jnp.ones((SNLI_H_DIM,), f32)),       # ln2_a
        row(jnp.zeros((SNLI_H_DIM,), f32)),      # ln2_b
        row(jnp.zeros((N_CLASSES,), f32)),       # b_out
    ], axis=0)

    return {"embed": embed, "lstm_w": lstm_w,
            "head_mats": head_mats, "head_vecs": head_vecs}


# ============================== full forward =================================
@jax.jit
def snli_forward(hyp_tokens, prem_tokens, params):
    # embedding lookup (glue, XLA)
    hyp_embed = jnp.take(params["embed"], hyp_tokens, axis=0)    # (B, T, E)
    prem_embed = jnp.take(params["embed"], prem_tokens, axis=0)  # (B, T, E)

    # time-major, batch-stacked: [hyp fwd, prem fwd, hyp bwd, prem bwd]
    hyp_tbe = jnp.transpose(hyp_embed, (1, 0, 2))                # (T, B, E)
    prem_tbe = jnp.transpose(prem_embed, (1, 0, 2))
    x_stack = jnp.concatenate(
        [hyp_tbe, prem_tbe, hyp_tbe[::-1], prem_tbe[::-1]], axis=1)      # (T, 4B, E)
    x_flat = x_stack.reshape(SEQ_LEN * 4 * BATCH, EMBED_DIM)             # (T*4B, E)

    # TODO(synk): SPINN tree-LSTM encoder (shift/reduce over transitions) is not
    # translated; the bidirectional LSTM summary_h is used as hyp/prem encoding.
    logits = pl.pallas_call(
        _snli_fused_kernel,
        out_shape=jax.ShapeDtypeStruct((BATCH, N_CLASSES), jnp.float32),
    )(x_flat, params["lstm_w"], params["head_mats"], params["head_vecs"])
    return logits


# ================================== main =====================================
if __name__ == "__main__":
    key = jax.random.PRNGKey(0)
    k_param, k_hyp, k_prem = jax.random.split(key, 3)

    params = init_params(k_param)
    hyp_tokens = jax.random.randint(k_hyp, (BATCH, SEQ_LEN), 1, VOCAB_SIZE, jnp.int32)
    prem_tokens = jax.random.randint(k_prem, (BATCH, SEQ_LEN), 1, VOCAB_SIZE, jnp.int32)

    logits = snli_forward(hyp_tokens, prem_tokens, params)
    jax.block_until_ready(logits)
    assert logits.shape == (BATCH, N_CLASSES)
    assert bool(jnp.all(jnp.isfinite(logits)))
    print("KERNEL_OK")
</pallas_src>

<mosaic_0001>
module attributes {stable_mosaic.version = 11 : i64} {
  func.func @_snli_fused_kernel(%arg0: memref<64x8xf32, #tpu.memory_space<vmem>>, %arg1: memref<24x64xf32, #tpu.memory_space<vmem>>, %arg2: memref<192x32xf32, #tpu.memory_space<vmem>>, %arg3: memref<10x128xf32, #tpu.memory_space<vmem>>, %arg4: memref<2x3xf32, #tpu.memory_space<vmem>>) attributes {dimension_semantics = [], scalar_prefetch = 0 : i64, scratch_operands = 0 : i64, tpu.core_type = #tpu.core_type<tc>} {
    %c0 = arith.constant 0 : index
    %c0_0 = arith.constant 0 : index
    %0 = vector.load %arg1[%c0, %c0_0] : memref<24x64xf32, #tpu.memory_space<vmem>>, vector<8x64xf32>
    %c8 = arith.constant 8 : index
    %c0_1 = arith.constant 0 : index
    %1 = vector.load %arg1[%c8, %c0_1] : memref<24x64xf32, #tpu.memory_space<vmem>>, vector<16x64xf32>
    %c2 = arith.constant 2 : index
    %c0_2 = arith.constant 0 : index
    %2 = vector.load %arg3[%c2, %c0_2] : memref<10x128xf32, #tpu.memory_space<vmem>>, vector<1x64xf32>
    %c0_3 = arith.constant 0 : index
    %c0_4 = arith.constant 0 : index
    %3 = vector.load %arg0[%c0_3, %c0_4] : memref<64x8xf32, #tpu.memory_space<vmem>>, vector<64x8xf32>
    %cst = arith.constant dense<0.000000e+00> : vector<64x64xf32>
    %4 = tpu.matmul %3, %0, %cst {dimension_numbers = #tpu.dot_dimension_numbers<[1], [0], [0], [1], [0, 0, 1, 1], [], []>} : vector<64x8xf32>, vector<8x64xf32>, vector<64x64xf32> -> vector<64x64xf32>
    %5 = vector.broadcast %2 : vector<1x64xf32> to vector<64x64xf32>
    %6 = arith.addf %4, %5 : vector<64x64xf32>
    %cst_5 = arith.constant 0.000000e+00 : f32
    %7 = vector.broadcast %cst_5 : f32 to vector<8x16xf32>
    %cst_6 = arith.constant 0.000000e+00 : f32
    %8 = vector.broadcast %cst_6 : f32 to vector<8x16xf32>
    %9 = vector.extract_strided_slice %6 {offsets = [0, 0], sizes = [8, 64], strides = [1, 1]} : vector<64x64xf32> to vector<8x64xf32>
    %cst_7 = arith.constant dense<0.000000e+00> : vector<8x64xf32>
    %10 = tpu.matmul %7, %1, %cst_7 {dimension_numbers = #tpu.dot_dimension_numbers<[1], [0], [0], [1], [0, 0, 1, 1], [], []>} : vector<8x16xf32>, vector<16x64xf32>, vector<8x64xf32> -> vector<8x64xf32>
    %11 = arith.addf %9, %10 : vector<8x64xf32>
    %12 = vector.extract_strided_slice %11 {offsets = [0, 0], sizes = [8, 48], strides = [1, 1]} : vector<8x64xf32> to vector<8x48xf32>
    %13 = arith.negf %12 : vector<8x48xf32>
    %14 = math.exp %13 : vector<8x48xf32>
    %cst_8 = arith.constant 1.000000e+00 : f32
    %15 = vector.broadcast %cst_8 : f32 to vector<8x48xf32>
    %16 = arith.addf %15, %14 : vector<8x48xf32>
    %17 = arith.divf %15, %16 : vector<8x48xf32>
    %18 = vector.extract_strided_slice %11 {offsets = [0, 48], sizes = [8, 16], strides = [1, 1]} : vector<8x64xf32> to vector<8x16xf32>
    %19 = math.tanh %18 : vector<8x16xf32>
    %20 = vector.extract_strided_slice %17 {offsets = [0, 0], sizes = [8, 16], strides = [1, 1]} : vector<8x48xf32> to vector<8x16xf32>
    %21 = vector.extract_strided_slice %17 {offsets = [0, 16], sizes = [8, 16], strides = [1, 1]} : vector<8x48xf32> to vector<8x16xf32>
    %22 = vector.extract_strided_slice %17 {offsets = [0, 32], sizes = [8, 16], strides = [1, 1]} : vector<8x48xf32> to vector<8x16xf32>
    %23 = arith.mulf %21, %8 : vector<8x16xf32>
    %24 = arith.mulf %20, %19 : vector<8x16xf32>
    %25 = arith.addf %23, %24 : vector<8x16xf32>
    %26 = math.tanh %25 : vector<8x16xf32>
    %27 = arith.mulf %22, %26 : vector<8x16xf32>
    %28 = vector.extract_strided_slice %6 {offsets = [8, 0], sizes = [8, 64], strides = [1, 1]} : vector<64x64xf32> to vector<8x64xf32>
    %cst_9 = arith.constant dense<0.000000e+00> : vector<8x64xf32>
    %29 = tpu.matmul %27, %1, %cst_9 {dimension_numbers = #tpu.dot_dimension_numbers<[1], [0], [0], [1], [0, 0, 1, 1], [], []>} : vector<8x16xf32>, vector<16x64xf32>, vector<8x64xf32> -> vector<8x64xf32>
    %30 = arith.addf %28, %29 : vector<8x64xf32>
    %31 = vector.extract_strided_slice %30 {offsets = [0, 0], sizes = [8, 48], strides = [1, 1]} : vector<8x64xf32> to vector<8x48xf32>
    %32 = arith.negf %31 : vector<8x48xf32>
    %33 = math.exp %32 : vector<8x48xf32>
    %cst_10 = arith.constant 1.000000e+00 : f32
    %34 = vector.broadcast %cst_10 : f32 to vector<8x48xf32>
    %35 = arith.addf %34, %33 : vector<8x48xf32>
    %36 = arith.divf %34, %35 : vector<8x48xf32>
    %37 = vector.extract_strided_slice %30 {offsets = [0, 48], sizes = [8, 16], strides = [1, 1]} : vector<8x64xf32> to vector<8x16xf32>
    %38 = math.tanh %37 : vector<8x16xf32>
    %39 = vector.extract_strided_slice %36 {offsets = [0, 0], sizes = [8, 16], strides = [1, 1]} : vector<8x48xf32> to vector<8x16xf32>
    %40 = vector.extract_strided_slice %36 {offsets = [0, 16], sizes = [8, 16], strides = [1, 1]} : vector<8x48xf32> to vector<8x16xf32>
    %41 = vector.extract_strided_slice %36 {offsets = [0, 32], sizes = [8, 16], strides = [1, 1]} : vector<8x48xf32> to vector<8x16xf32>
    %42 = arith.mulf %40, %25 : vector<8x16xf32>
    %43 = arith.mulf %39, %38 : vector<8x16xf32>
    %44 = arith.addf %42, %43 : vector<8x16xf32>
    %45 = math.tanh %44 : vector<8x16xf32>
    %46 = arith.mulf %41, %45 : vector<8x16xf32>
    %47 = vector.extract_strided_slice %6 {offsets = [16, 0], sizes = [8, 64], strides = [1, 1]} : vector<64x64xf32> to vector<8x64xf32>
    %cst_11 = arith.constant dense<0.000000e+00> : vector<8x64xf32>
    %48 = tpu.matmul %46, %1, %cst_11 {dimension_numbers = #tpu.dot_dimension_numbers<[1], [0], [0], [1], [0, 0, 1, 1], [], []>} : vector<8x16xf32>, vector<16x64xf32>, vector<8x64xf32> -> vector<8x64xf32>
    %49 = arith.addf %47, %48 : vector<8x64xf32>
    %50 = vector.extract_strided_slice %49 {offsets = [0, 0], sizes = [8, 48], strides = [1, 1]} : vector<8x64xf32> to vector<8x48xf32>
    %51 = arith.negf %50 : vector<8x48xf32>
    %52 = math.exp %51 : vector<8x48xf32>
    %cst_12 = arith.constant 1.000000e+00 : f32
    %53 = vector.broadcast %cst_12 : f32 to vector<8x48xf32>
    %54 = arith.addf %53, %52 : vector<8x48xf32>
    %55 = arith.divf %53, %54 : vector<8x48xf32>
    %56 = vector.extract_strided_slice %49 {offsets = [0, 48], sizes = [8, 16], strides = [1, 1]} : vector<8x64xf32> to vector<8x16xf32>
    %57 = math.tanh %56 : vector<8x16xf32>
    %58 = vector.extract_strided_slice %55 {offsets = [0, 0], sizes = [8, 16], strides = [1, 1]} : vector<8x48xf32> to vector<8x16xf32>
    %59 = vector.extract_strided_slice %55 {offsets = [0, 16], sizes = [8, 16], strides = [1, 1]} : vector<8x48xf32> to vector<8x16xf32>
    %60 = vector.extract_strided_slice %55 {offsets = [0, 32], sizes = [8, 16], strides = [1, 1]} : vector<8x48xf32> to vector<8x16xf32>
    %61 = arith.mulf %59, %44 : vector<8x16xf32>
    %62 = arith.mulf %58, %57 : vector<8x16xf32>
    %63 = arith.addf %61, %62 : vector<8x16xf32>
    %64 = math.tanh %63 : vector<8x16xf32>
    %65 = arith.mulf %60, %64 : vector<8x16xf32>
    %66 = vector.extract_strided_slice %6 {offsets = [24, 0], sizes = [8, 64], strides = [1, 1]} : vector<64x64xf32> to vector<8x64xf32>
    %cst_13 = arith.constant dense<0.000000e+00> : vector<8x64xf32>
    %67 = tpu.matmul %65, %1, %cst_13 {dimension_numbers = #tpu.dot_dimension_numbers<[1], [0], [0], [1], [0, 0, 1, 1], [], []>} : vector<8x16xf32>, vector<16x64xf32>, vector<8x64xf32> -> vector<8x64xf32>
    %68 = arith.addf %66, %67 : vector<8x64xf32>
    %69 = vector.extract_strided_slice %68 {offsets = [0, 0], sizes = [8, 48], strides = [1, 1]} : vector<8x64xf32> to vector<8x48xf32>
    %70 = arith.negf %69 : vector<8x48xf32>
    %71 = math.exp %70 : vector<8x48xf32>
    %cst_14 = arith.constant 1.000000e+00 : f32
    %72 = vector.broadcast %cst_14 : f32 to vector<8x48xf32>
    %73 = arith.addf %72, %71 : vector<8x48xf32>
    %74 = arith.divf %72, %73 : vector<8x48xf32>
    %75 = vector.extract_strided_slice %68 {offsets = [0, 48], sizes = [8, 16], strides = [1, 1]} : vector<8x64xf32> to vector<8x16xf32>
    %76 = math.tanh %75 : vector<8x16xf32>
    %77 = vector.extract_strided_slice %74 {offsets = [0, 0], sizes = [8, 16], strides = [1, 1]} : vector<8x48xf32> to vector<8x16xf32>
    %78 = vector.extract_strided_slice %74 {offsets = [0, 16], sizes = [8, 16], strides = [1, 1]} : vector<8x48xf32> to vector<8x16xf32>
    %79 = vector.extract_strided_slice %74 {offsets = [0, 32], sizes = [8, 16], strides = [1, 1]} : vector<8x48xf32> to vector<8x16xf32>
    %80 = arith.mulf %78, %63 : vector<8x16xf32>
    %81 = arith.mulf %77, %76 : vector<8x16xf32>
    %82 = arith.addf %80, %81 : vector<8x16xf32>
    %83 = math.tanh %82 : vector<8x16xf32>
    %84 = arith.mulf %79, %83 : vector<8x16xf32>
    %85 = vector.extract_strided_slice %6 {offsets = [32, 0], sizes = [8, 64], strides = [1, 1]} : vector<64x64xf32> to vector<8x64xf32>
    %cst_15 = arith.constant dense<0.000000e+00> : vector<8x64xf32>
    %86 = tpu.matmul %84, %1, %cst_15 {dimension_numbers = #tpu.dot_dimension_numbers<[1], [0], [0], [1], [0, 0, 1, 1], [], []>} : vector<8x16xf32>, vector<16x64xf32>, vector<8x64xf32> -> vector<8x64xf32>
    %87 = arith.addf %85, %86 : vector<8x64xf32>
    %88 = vector.extract_strided_slice %87 {offsets = [0, 0], sizes = [8, 48], strides = [1, 1]} : vector<8x64xf32> to vector<8x48xf32>
    %89 = arith.negf %88 : vector<8x48xf32>
    %90 = math.exp %89 : vector<8x48xf32>
    %cst_16 = arith.constant 1.000000e+00 : f32
    %91 = vector.broadcast %cst_16 : f32 to vector<8x48xf32>
    %92 = arith.addf %91, %90 : vector<8x48xf32>
    %93 = arith.divf %91, %92 : vector<8x48xf32>
    %94 = vector.extract_strided_slice %87 {offsets = [0, 48], sizes = [8, 16], strides = [1, 1]} : vector<8x64xf32> to vector<8x16xf32>
    %95 = math.tanh %94 : vector<8x16xf32>
    %96 = vector.extract_strided_slice %93 {offsets = [0, 0], sizes = [8, 16], strides = [1, 1]} : vector<8x48xf32> to vector<8x16xf32>
    %97 = vector.extract_strided_slice %93 {offsets = [0, 16], sizes = [8, 16], strides = [1, 1]} : vector<8x48xf32> to vector<8x16xf32>
    %98 = vector.extract_strided_slice %93 {offsets = [0, 32], sizes = [8, 16], strides = [1, 1]} : vector<8x48xf32> to vector<8x16xf32>
    %99 = arith.mulf %97, %82 : vector<8x16xf32>
    %100 = arith.mulf %96, %95 : vector<8x16xf32>
    %101 = arith.addf %99, %100 : vector<8x16xf32>
    %102 = math.tanh %101 : vector<8x16xf32>
    %103 = arith.mulf %98, %102 : vector<8x16xf32>
    %104 = vector.extract_strided_slice %6 {offsets = [40, 0], sizes = [8, 64], strides = [1, 1]} : vector<64x64xf32> to vector<8x64xf32>
    %cst_17 = arith.constant dense<0.000000e+00> : vector<8x64xf32>
    %105 = tpu.matmul %103, %1, %cst_17 {dimension_numbers = #tpu.dot_dimension_numbers<[1], [0], [0], [1], [0, 0, 1, 1], [], []>} : vector<8x16xf32>, vector<16x64xf32>, vector<8x64xf32> -> vector<8x64xf32>
    %106 = arith.addf %104, %105 : vector<8x64xf32>
    %107 = vector.extract_strided_slice %106 {offsets = [0, 0], sizes = [8, 48], strides = [1, 1]} : vector<8x64xf32> to vector<8x48xf32>
    %108 = arith.negf %107 : vector<8x48xf32>
    %109 = math.exp %108 : vector<8x48xf32>
    %cst_18 = arith.constant 1.000000e+00 : f32
    %110 = vector.broadcast %cst_18 : f32 to vector<8x48xf32>
    %111 = arith.addf %110, %109 : vector<8x48xf32>
    %112 = arith.divf %110, %111 : vector<8x48xf32>
    %113 = vector.extract_strided_slice %106 {offsets = [0, 48], sizes = [8, 16], strides = [1, 1]} : vector<8x64xf32> to vector<8x16xf32>
    %114 = math.tanh %113 : vector<8x16xf32>
    %115 = vector.extract_strided_slice %112 {offsets = [0, 0], sizes = [8, 16], strides = [1, 1]} : vector<8x48xf32> to vector<8x16xf32>
    %116 = vector.extract_strided_slice %112 {offsets = [0, 16], sizes = [8, 16], strides = [1, 1]} : vector<8x48xf32> to vector<8x16xf32>
    %117 = vector.extract_strided_slice %112 {offsets = [0, 32], sizes = [8, 16], strides = [1, 1]} : vector<8x48xf32> to vector<8x16xf32>
    %118 = arith.mulf %116, %101 : vector<8x16xf32>
    %119 = arith.mulf %115, %114 : vector<8x16xf32>
    %120 = arith.addf %118, %119 : vector<8x16xf32>
    %121 = math.tanh %120 : vector<8x16xf32>
    %122 = arith.mulf %117, %121 : vector<8x16xf32>
    %123 = vector.extract_strided_slice %6 {offsets = [48, 0], sizes = [8, 64], strides = [1, 1]} : vector<64x64xf32> to vector<8x64xf32>
    %cst_19 = arith.constant dense<0.000000e+00> : vector<8x64xf32>
    %124 = tpu.matmul %122, %1, %cst_19 {dimension_numbers = #tpu.dot_dimension_numbers<[1], [0], [0], [1], [0, 0, 1, 1], [], []>} : vector<8x16xf32>, vector<16x64xf32>, vector<8x64xf32> -> vector<8x64xf32>
    %125 = arith.addf %123, %124 : vector<8x64xf32>
    %126 = vector.extract_strided_slice %125 {offsets = [0, 0], sizes = [8, 48], strides = [1, 1]} : vector<8x64xf32> to vector<8x48xf32>
    %127 = arith.negf %126 : vector<8x48xf32>
    %128 = math.exp %127 : vector<8x48xf32>
    %cst_20 = arith.constant 1.000000e+00 : f32
    %129 = vector.broadcast %cst_20 : f32 to vector<8x48xf32>
    %130 = arith.addf %129, %128 : vector<8x48xf32>
    %131 = arith.divf %129, %130 : vector<8x48xf32>
    %132 = vector.extract_strided_slice %125 {offsets = [0, 48], sizes = [8, 16], strides = [1, 1]} : vector<8x64xf32> to vector<8x16xf32>
    %133 = math.tanh %132 : vector<8x16xf32>
    %134 = vector.extract_strided_slice %131 {offsets = [0, 0], sizes = [8, 16], strides = [1, 1]} : vector<8x48xf32> to vector<8x16xf32>
    %135 = vector.extract_strided_slice %131 {offsets = [0, 16], sizes = [8, 16], strides = [1, 1]} : vector<8x48xf32> to vector<8x16xf32>
    %136 = vector.extract_strided_slice %131 {offsets = [0, 32], sizes = [8, 16], strides = [1, 1]} : vector<8x48xf32> to vector<8x16xf32>
    %137 = arith.mulf %135, %120 : vector<8x16xf32>
    %138 = arith.mulf %134, %133 : vector<8x16xf32>
    %139 = arith.addf %137, %138 : vector<8x16xf32>
    %140 = math.tanh %139 : vector<8x16xf32>
    %141 = arith.mulf %136, %140 : vector<8x16xf32>
    %142 = vector.extract_strided_slice %6 {offsets = [56, 0], sizes = [8, 64], strides = [1, 1]} : vector<64x64xf32> to vector<8x64xf32>
    %cst_21 = arith.constant dense<0.000000e+00> : vector<8x64xf32>
    %143 = tpu.matmul %141, %1, %cst_21 {dimension_numbers = #tpu.dot_dimension_numbers<[1], [0], [0], [1], [0, 0, 1, 1], [], []>} : vector<8x16xf32>, vector<16x64xf32>, vector<8x64xf32> -> vector<8x64xf32>
    %144 = arith.addf %142, %143 : vector<8x64xf32>
    %145 = vector.extract_strided_slice %144 {offsets = [0, 0], sizes = [8, 48], strides = [1, 1]} : vector<8x64xf32> to vector<8x48xf32>
    %146 = arith.negf %145 : vector<8x48xf32>
    %147 = math.exp %146 : vector<8x48xf32>
    %cst_22 = arith.constant 1.000000e+00 : f32
    %148 = vector.broadcast %cst_22 : f32 to vector<8x48xf32>
    %149 = arith.addf %148, %147 : vector<8x48xf32>
    %150 = arith.divf %148, %149 : vector<8x48xf32>
    %151 = vector.extract_strided_slice %144 {offsets = [0, 48], sizes = [8, 16], strides = [1, 1]} : vector<8x64xf32> to vector<8x16xf32>
    %152 = math.tanh %151 : vector<8x16xf32>
    %153 = vector.extract_strided_slice %150 {offsets = [0, 0], sizes = [8, 16], strides = [1, 1]} : vector<8x48xf32> to vector<8x16xf32>
    %154 = vector.extract_strided_slice %150 {offsets = [0, 16], sizes = [8, 16], strides = [1, 1]} : vector<8x48xf32> to vector<8x16xf32>
    %155 = vector.extract_strided_slice %150 {offsets = [0, 32], sizes = [8, 16], strides = [1, 1]} : vector<8x48xf32> to vector<8x16xf32>
    %156 = arith.mulf %154, %139 : vector<8x16xf32>
    %157 = arith.mulf %153, %152 : vector<8x16xf32>
    %158 = arith.addf %156, %157 : vector<8x16xf32>
    %159 = math.tanh %158 : vector<8x16xf32>
    %160 = arith.mulf %155, %159 : vector<8x16xf32>
    %161 = vector.extract_strided_slice %160 {offsets = [0, 0], sizes = [2, 16], strides = [1, 1]} : vector<8x16xf32> to vector<2x16xf32>
    %162 = vector.extract_strided_slice %160 {offsets = [4, 0], sizes = [2, 16], strides = [1, 1]} : vector<8x16xf32> to vector<2x16xf32>
    %163 = tpu.concatenate %161, %162 in 1 : vector<2x16xf32>, vector<2x16xf32> -> vector<2x32xf32>
    %164 = vector.extract_strided_slice %160 {offsets = [2, 0], sizes = [2, 16], strides = [1, 1]} : vector<8x16xf32> to vector<2x16xf32>
    %165 = vector.extract_strided_slice %160 {offsets = [6, 0], sizes = [2, 16], strides = [1, 1]} : vector<8x16xf32> to vector<2x16xf32>
    %166 = tpu.concatenate %164, %165 in 1 : vector<2x16xf32>, vector<2x16xf32> -> vector<2x32xf32>
    %167 = arith.subf %166, %163 : vector<2x32xf32>
    %168 = arith.mulf %163, %166 : vector<2x32xf32>
    %169 = tpu.concatenate %163, %166, %167, %168 in 1 : vector<2x32xf32>, vector<2x32xf32>, vector<2x32xf32>, vector<2x32xf32> -> vector<2x128xf32>
    %c0_23 = arith.constant 0 : index
    %c0_24 = arith.constant 0 : index
    %170 = vector.load %arg3[%c0_23, %c0_24] : memref<10x128xf32, #tpu.memory_space<vmem>>, vector<1x128xf32>
    %c1 = arith.constant 1 : index
    %c0_25 = arith.constant 0 : index
    %171 = vector.load %arg3[%c1, %c0_25] : memref<10x128xf32, #tpu.memory_space<vmem>>, vector<1x128xf32>
    %cst_26 = arith.constant dense<0.000000e+00> : vector<2xf32>
    %172 = vector.multi_reduction <add>, %169, %cst_26 [1] : vector<2x128xf32> to vector<2xf32>
    %173 = vector.shape_cast %172 : vector<2xf32> to vector<2x1xf32>
    %cst_27 = arith.constant 1.280000e+02 : f32
    %174 = vector.broadcast %cst_27 : f32 to vector<2x1xf32>
    %175 = arith.divf %173, %174 : vector<2x1xf32>
    %176 = vector.broadcast %175 : vector<2x1xf32> to vector<2x128xf32>
    %177 = arith.subf %169, %176 : vector<2x128xf32>
    %178 = arith.mulf %177, %177 : vector<2x128xf32>
    %cst_28 = arith.constant dense<0.000000e+00> : vector<2xf32>
    %179 = vector.multi_reduction <add>, %178, %cst_28 [1] : vector<2x128xf32> to vector<2xf32>
    %180 = vector.shape_cast %179 : vector<2xf32> to vector<2x1xf32>
    %cst_29 = arith.constant 0.00787401571 : f32
    %181 = vector.broadcast %cst_29 : f32 to vector<2x1xf32>
    %182 = arith.mulf %180, %181 : vector<2x1xf32>
    %183 = math.sqrt %182 : vector<2x1xf32>
    %cst_30 = arith.constant 9.99999997E-7 : f32
    %184 = vector.broadcast %cst_30 : f32 to vector<2x1xf32>
    %185 = arith.addf %183, %184 : vector<2x1xf32>
    %186 = vector.broadcast %185 : vector<2x1xf32> to vector<2x128xf32>
    %187 = arith.divf %177, %186 : vector<2x128xf32>
    %188 = vector.broadcast %170 : vector<1x128xf32> to vector<2x128xf32>
    %189 = arith.mulf %187, %188 : vector<2x128xf32>
    %190 = vector.broadcast %171 : vector<1x128xf32> to vector<2x128xf32>
    %191 = arith.addf %189, %190 : vector<2x128xf32>
    %c0_31 = arith.constant 0 : index
    %c0_32 = arith.constant 0 : index
    %192 = vector.load %arg2[%c0_31, %c0_32] : memref<192x32xf32, #tpu.memory_space<vmem>>, vector<128x32xf32>
    %c128 = arith.constant 128 : index
    %c0_33 = arith.constant 0 : index
    %193 = vector.load %arg2[%c128, %c0_33] : memref<192x32xf32, #tpu.memory_space<vmem>>, vector<32x32xf32>
    %c160 = arith.constant 160 : index
    %c0_34 = arith.constant 0 : index
    %194 = vector.load %arg2[%c160, %c0_34] : memref<192x32xf32, #tpu.memory_space<vmem>>, vector<32x3xf32>
    %cst_35 = arith.constant dense<0.000000e+00> : vector<2x32xf32>
    %195 = tpu.matmul %191, %192, %cst_35 {dimension_numbers = #tpu.dot_dimension_numbers<[1], [0], [0], [1], [0, 0, 1, 1], [], []>} : vector<2x128xf32>, vector<128x32xf32>, vector<2x32xf32> -> vector<2x32xf32>
    %c3 = arith.constant 3 : index
    %c0_36 = arith.constant 0 : index
    %196 = vector.load %arg3[%c3, %c0_36] : memref<10x128xf32, #tpu.memory_space<vmem>>, vector<1x32xf32>
    %197 = vector.broadcast %196 : vector<1x32xf32> to vector<2x32xf32>
    %198 = arith.addf %195, %197 : vector<2x32xf32>
    %cst_37 = arith.constant 0.000000e+00 : f32
    %199 = vector.broadcast %cst_37 : f32 to vector<2x32xf32>
    %200 = arith.maximumf %198, %199 : vector<2x32xf32>
    %c4 = arith.constant 4 : index
    %c0_38 = arith.constant 0 : index
    %201 = vector.load %arg3[%c4, %c0_38] : memref<10x128xf32, #tpu.memory_space<vmem>>, vector<1x32xf32>
    %c5 = arith.constant 5 : index
    %c0_39 = arith.constant 0 : index
    %202 = vector.load %arg3[%c5, %c0_39] : memref<10x128xf32, #tpu.memory_space<vmem>>, vector<1x32xf32>
    %cst_40 = arith.constant dense<0.000000e+00> : vector<2xf32>
    %203 = vector.multi_reduction <add>, %200, %cst_40 [1] : vector<2x32xf32> to vector<2xf32>
    %204 = vector.shape_cast %203 : vector<2xf32> to vector<2x1xf32>
    %cst_41 = arith.constant 3.200000e+01 : f32
    %205 = vector.broadcast %cst_41 : f32 to vector<2x1xf32>
    %206 = arith.divf %204, %205 : vector<2x1xf32>
    %207 = vector.broadcast %206 : vector<2x1xf32> to vector<2x32xf32>
    %208 = arith.subf %200, %207 : vector<2x32xf32>
    %209 = arith.mulf %208, %208 : vector<2x32xf32>
    %cst_42 = arith.constant dense<0.000000e+00> : vector<2xf32>
    %210 = vector.multi_reduction <add>, %209, %cst_42 [1] : vector<2x32xf32> to vector<2xf32>
    %211 = vector.shape_cast %210 : vector<2xf32> to vector<2x1xf32>
    %cst_43 = arith.constant 0.0322580636 : f32
    %212 = vector.broadcast %cst_43 : f32 to vector<2x1xf32>
    %213 = arith.mulf %211, %212 : vector<2x1xf32>
    %214 = math.sqrt %213 : vector<2x1xf32>
    %cst_44 = arith.constant 9.99999997E-7 : f32
    %215 = vector.broadcast %cst_44 : f32 to vector<2x1xf32>
    %216 = arith.addf %214, %215 : vector<2x1xf32>
    %217 = vector.broadcast %216 : vector<2x1xf32> to vector<2x32xf32>
    %218 = arith.divf %208, %217 : vector<2x32xf32>
    %219 = vector.broadcast %201 : vector<1x32xf32> to vector<2x32xf32>
    %220 = arith.mulf %218, %219 : vector<2x32xf32>
    %221 = vector.broadcast %202 : vector<1x32xf32> to vector<2x32xf32>
    %222 = arith.addf %220, %221 : vector<2x32xf32>
    %cst_45 = arith.constant dense<0.000000e+00> : vector<2x32xf32>
    %223 = tpu.matmul %222, %193, %cst_45 {dimension_numbers = #tpu.dot_dimension_numbers<[1], [0], [0], [1], [0, 0, 1, 1], [], []>} : vector<2x32xf32>, vector<32x32xf32>, vector<2x32xf32> -> vector<2x32xf32>
    %c6 = arith.constant 6 : index
    %c0_46 = arith.constant 0 : index
    %224 = vector.load %arg3[%c6, %c0_46] : memref<10x128xf32, #tpu.memory_space<vmem>>, vector<1x32xf32>
    %225 = vector.broadcast %224 : vector<1x32xf32> to vector<2x32xf32>
    %226 = arith.addf %223, %225 : vector<2x32xf32>
    %cst_47 = arith.constant 0.000000e+00 : f32
    %227 = vector.broadcast %cst_47 : f32 to vector<2x32xf32>
    %228 = arith.maximumf %226, %227 : vector<2x32xf32>
    %c7 = arith.constant 7 : index
    %c0_48 = arith.constant 0 : index
    %229 = vector.load %arg3[%c7, %c0_48] : memref<10x128xf32, #tpu.memory_space<vmem>>, vector<1x32xf32>
    %c8_49 = arith.constant 8 : index
    %c0_50 = arith.constant 0 : index
    %230 = vector.load %arg3[%c8_49, %c0_50] : memref<10x128xf32, #tpu.memory_space<vmem>>, vector<1x32xf32>
    %cst_51 = arith.constant dense<0.000000e+00> : vector<2xf32>
    %231 = vector.multi_reduction <add>, %228, %cst_51 [1] : vector<2x32xf32> to vector<2xf32>
    %232 = vector.shape_cast %231 : vector<2xf32> to vector<2x1xf32>
    %cst_52 = arith.constant 3.200000e+01 : f32
    %233 = vector.broadcast %cst_52 : f32 to vector<2x1xf32>
    %234 = arith.divf %232, %233 : vector<2x1xf32>
    %235 = vector.broadcast %234 : vector<2x1xf32> to vector<2x32xf32>
    %236 = arith.subf %228, %235 : vector<2x32xf32>
    %237 = arith.mulf %236, %236 : vector<2x32xf32>
    %cst_53 = arith.constant dense<0.000000e+00> : vector<2xf32>
    %238 = vector.multi_reduction <add>, %237, %cst_53 [1] : vector<2x32xf32> to vector<2xf32>
    %239 = vector.shape_cast %238 : vector<2xf32> to vector<2x1xf32>
    %cst_54 = arith.constant 0.0322580636 : f32
    %240 = vector.broadcast %cst_54 : f32 to vector<2x1xf32>
    %241 = arith.mulf %239, %240 : vector<2x1xf32>
    %242 = math.sqrt %241 : vector<2x1xf32>
    %cst_55 = arith.constant 9.99999997E-7 : f32
    %243 = vector.broadcast %cst_55 : f32 to vector<2x1xf32>
    %244 = arith.addf %242, %243 : vector<2x1xf32>
    %245 = vector.broadcast %244 : vector<2x1xf32> to vector<2x32xf32>
    %246 = arith.divf %236, %245 : vector<2x32xf32>
    %247 = vector.broadcast %229 : vector<1x32xf32> to vector<2x32xf32>
    %248 = arith.mulf %246, %247 : vector<2x32xf32>
    %249 = vector.broadcast %230 : vector<1x32xf32> to vector<2x32xf32>
    %250 = arith.addf %248, %249 : vector<2x32xf32>
    %cst_56 = arith.constant dense<0.000000e+00> : vector<2x3xf32>
    %251 = tpu.matmul %250, %194, %cst_56 {dimension_numbers = #tpu.dot_dimension_numbers<[1], [0], [0], [1], [0, 0, 1, 1], [], []>} : vector<2x32xf32>, vector<32x3xf32>, vector<2x3xf32> -> vector<2x3xf32>
    %c9 = arith.constant 9 : index
    %c0_57 = arith.constant 0 : index
    %252 = vector.load %arg3[%c9, %c0_57] : memref<10x128xf32, #tpu.memory_space<vmem>>, vector<1x3xf32>
    %253 = vector.broadcast %252 : vector<1x3xf32> to vector<2x3xf32>
    %254 = arith.addf %251, %253 : vector<2x3xf32>
    %c0_58 = arith.constant 0 : index
    %c0_59 = arith.constant 0 : index
    %255 = vector.load %arg4[%c0_58, %c0_59] : memref<2x3xf32, #tpu.memory_space<vmem>>, vector<2x3xf32>
    tpu.vector_store %arg4[%c0_58, %c0_59], %254 {strides = array<i32>} : memref<2x3xf32, #tpu.memory_space<vmem>>, vector<2x3xf32>,
    return
  }
}

</mosaic_0001>

<llo_original>
// kernel: snli_forward.1
$region0: #{snli_forward.1}
  #allocation0 [shape = 'u32[]', space=smem, size = 0x4, offset = 0x4, fixed_abs, tag = 'smem constant byte address 0x4 - core index']
  #allocation1 [shape = 'u32[72,128]{1,0:T(1,128)}', space=vmem, size = 0x9000, scoped, tag = 'internal scratch']
  %s0 = inlined_call_operand.vmem [shape: f32[64,8], index: 0, kind: input, shape index: {}]
  %s1 = inlined_call_operand.vmem [shape: f32[24,64], index: 1, kind: input, shape index: {}]
  %s2 = inlined_call_operand.vmem [shape: f32[192,32], index: 2, kind: input, shape index: {}]
  %s3 = inlined_call_operand.vmem [shape: f32[10,128], index: 3, kind: input, shape index: {}]
  %s4 = inlined_call_operand.hbm [shape: f32[2,3], index: 4, kind: output, shape index: {}]
  %s5 = sld [smem:[#allocation0]]
  $region26: #{snli_forward.1} parent=0
    _
  %s7 = ssub.s32 1, %s5
  %s8 = scalar_select 0, %s7, %s5
  $region1: #{snli_forward.1} parent=0
    #allocation2 [shape = 'u8[1024]{0}', space=vmem, size = 0x400, scoped, tag = 'output window, operand 0, single buffered']
    #allocation3 [shape = 's32[1]{0}', space=sflag, size = 0x4, scoped, tag = 'scoped memory for snli_forward.1']
    %9 = vsyncpa [#allocation3], 0
    // Predicated region
    $region2: #{snli_forward.1} parent=1 // pred_check
      _
    $region3: #{snli_forward.1} parent=1 // pred_check_branch
      %11 = sbr.rel (0) target = $region5
    $region4: #{snli_forward.1} parent=1 // pred_region
      _
    $region5: #{snli_forward.1} parent=1 // pred_fallthru
      _
    // Predicated region
    $region6: #{snli_forward.1} parent=1 // pred_check
      _
    $region7: #{snli_forward.1} parent=1 // pred_check_branch
      %13 = sbr.rel (0) target = $region9
    $region8: #{snli_forward.1} parent=1 // pred_region
      _
    $region9: #{snli_forward.1} parent=1 // pred_fallthru
      _
    // Predicated region
    $region10: #{snli_forward.1} parent=1 // pred_check
      _
    $region11: #{snli_forward.1} parent=1 // pred_check_branch
      %15 = sbr.rel (0) target = $region13
    $region12: #{snli_forward.1} parent=1 // pred_region
      _
    $region13: #{snli_forward.1} parent=1 // pred_fallthru
      _
    // Predicated region
    $region14: #{snli_forward.1} parent=1 // pred_check
      _
    $region15: #{snli_forward.1} parent=1 // pred_check_branch
      %17 = sbr.rel (0) target = $region17
    $region16: #{snli_forward.1} parent=1 // pred_region
      _
    $region17: #{snli_forward.1} parent=1 // pred_fallthru
      _
    %v18 = vld [vmem:[%s1] sm:$0xff]
    %v19 = vld [vmem:[%s1 + $0x8] sm:$0xff]
    %v20 = vld [vmem:[%s1 + $0x10] sm:$0xff]
    %v21 = vld [vmem:[%s3 + $0x2] sm:$0x1]
    %v22 = vld [vmem:[%s0] sm:$0xff]
    %v23 = vld [vmem:[%s0 + $0x8] sm:$0xff]
    %v24 = vld [vmem:[%s0 + $0x10] sm:$0xff]
    %v25 = vld [vmem:[%s0 + $0x18] sm:$0xff]
    %v26 = vld [vmem:[%s0 + $0x20] sm:$0xff]
    %v27 = vld [vmem:[%s0 + $0x28] sm:$0xff]
    %v28 = vld [vmem:[%s0 + $0x30] sm:$0xff]
    %v29 = vld [vmem:[%s0 + $0x38] sm:$0xff]
    %v30 = vperm.slane %v21, 0
    %vm31 = vcmask 64512
    %v33 = vsel %vm31, %v22, 0
    %v36 = vsel %vm31, %v23, 0
    %v39 = vsel %vm31, %v24, 0
    %v42 = vsel %vm31, %v25, 0
    %v45 = vsel %vm31, %v26, 0
    %v48 = vsel %vm31, %v27, 0
    %v51 = vsel %vm31, %v28, 0
    %v54 = vsel %vm31, %v29, 0
    %56 = vmatpush.msra.mxu0 0.0
    %57 = vmatpush.msra.mxu0 0.0
    %58 = vmatpush.msra.mxu0 0.0
    %59 = vmatpush.msra.mxu0 0.0
    %60 = vmatpush.msra.mxu0 0.0
    %61 = vmatpush.msra.mxu0 0.0
    %62 = vmatpush.msra.mxu0 0.0
    %63 = vmatpush.msra.mxu0 0.0
    %64 = vmatpush.msra.mxu0 0.0
    %65 = vmatpush.msra.mxu0 0.0
    %66 = vmatpush.msra.mxu0 0.0
    %67 = vmatpush.msra.mxu0 0.0
    %68 = vmatpush.msra.mxu0 0.0
    %69 = vmatpush.msra.mxu0 0.0
    %70 = vmatpush.msra.mxu0 0.0
    %71 = vmatpush.msra.mxu0 %v18
    %72 = vmatmul.f32.gmra.mxu0 %v33
    %v73 = vpop.f32.mrf.mxu0
    %v74 = vadd.f32 %v30, %v73
    %75 = vmatmul.f32.gmra.mxu0 %v36
    %v76 = vpop.f32.mrf.mxu0
    %v77 = vadd.f32 %v30, %v76
    %78 = vmatmul.f32.gmra.mxu0 %v39
    %v79 = vpop.f32.mrf.mxu0
    %v80 = vadd.f32 %v30, %v79
    %81 = vmatmul.f32.gmra.mxu0 %v42
    %v82 = vpop.f32.mrf.mxu0
    %v83 = vadd.f32 %v30, %v82
    %84 = vmatmul.f32.gmra.mxu0 %v45
    %v85 = vpop.f32.mrf.mxu0
    %v86 = vadd.f32 %v30, %v85
    %87 = vmatmul.f32.gmra.mxu0 %v48
    %v88 = vpop.f32.mrf.mxu0
    %v89 = vadd.f32 %v30, %v88
    %90 = vmatmul.f32.gmra.mxu0 %v51
    %v91 = vpop.f32.mrf.mxu0
    %v92 = vadd.f32 %v30, %v91
    %93 = vmatmul.f32.gmra.mxu0 %v54
    %v94 = vpop.f32.mrf.mxu0
    %v95 = vadd.f32 %v30, %v94
    %96 = vdwg.mxu0
    %vm97 = vcmask 130048
    %v99 = vsel %vm97, 0.0, 0
    %101 = vmatpush.msra.mxu0 0.0
    %102 = vmatpush.msra.mxu0 0.0
    %103 = vmatpush.msra.mxu0 0.0
    %104 = vmatpush.msra.mxu0 0.0
    %105 = vmatpush.msra.mxu0 0.0
    %106 = vmatpush.msra.mxu0 0.0
    %107 = vmatpush.msra.mxu0 0.0
    %108 = vmatpush.msra.mxu0 0.0
    %109 = vmatpush.msra.mxu0 0.0
    %110 = vmatpush.msra.mxu0 0.0
    %111 = vmatpush.msra.mxu0 0.0
    %112 = vmatpush.msra.mxu0 0.0
    %113 = vmatpush.msra.mxu0 0.0
    %114 = vmatpush.msra.mxu0 0.0
    %115 = vmatpush.msra.mxu0 %v20
    %116 = vmatpush.msra.mxu0 %v19
    %117 = vmatmul.f32.gmra.mxu0 %v99
    %v118 = vpop.f32.mrf.mxu0
    %v119 = vadd.f32 0.0, %v118
    %120 = vdwg.mxu0
    %v121 = vadd.f32 %v74, %v119
    %v122 = vxor.u32 %v121, 2147483648
    %v123 = vmul.f32 %v122, 1.442695
    %v124 = vpow.pop %v123
    %v125 = vadd.f32 %v124, 1.0
    %v126 = vrcp.pop %v125
    %v127 = vmul.f32 %v125, %v126
    %v128 = vsub.f32 1.0, %v127
    %v129 = vmul.f32 %v126, %v128
    %v130 = vadd.f32 %v126, %v129
    %vm131 = vweird.f32 %v125
    %vm132 = vweird.f32 %v126
    %vm133 = vmor %vm131, %vm132
    %v134 = vsel %vm133, %v126, %v130
    %v135 = vand.u32 2147483647, %v125
    %vm136 = vcmp.eq.f32.partialorder %v135, 8.507059e+37
    %v137 = vand.u32 %v125, 2147483648
    %v138 = vor.u32 1.1754944e-38, %v137
    %v139 = vsel %vm136, %v138, %v134
    %v140 = vmul.f32 1.0, %v139
    %v141 = vtanh.pop %v121
    %v142 = vmul.f32 %v140, 0.0
    %144 = vrot.lane.b32.xlu0 %v141, 80
    %v145 = vpop.permute.xlu0 %144
    %v147 = vmul.f32 %v140, %v145
    %149 = vrot.lane.b32.xlu0 %v147, 16
    %v150 = vpop.permute.xlu0 %149
    %v152 = vadd.f32 %v142, %v150
    %v153 = vtanh.pop %v152
    %155 = vrot.lane.b32.xlu0 %v153, 16
    %v156 = vpop.permute.xlu0 %155
    %v158 = vmul.f32 %v140, %v156
    %160 = vrot.lane.b32.xlu0 %v158, 96
    %v161 = vpop.permute.xlu0 %160
    %v162 = vsel %vm97, %v161, 0
    %164 = vmatpush.msra.mxu0 0.0
    %165 = vmatpush.msra.mxu0 0.0
    %166 = vmatpush.msra.mxu0 0.0
    %167 = vmatpush.msra.mxu0 0.0
    %168 = vmatpush.msra.mxu0 0.0
    %169 = vmatpush.msra.mxu0 0.0
    %170 = vmatpush.msra.mxu0 0.0
    %171 = vmatpush.msra.mxu0 0.0
    %172 = vmatpush.msra.mxu0 0.0
    %173 = vmatpush.msra.mxu0 0.0
    %174 = vmatpush.msra.mxu0 0.0
    %175 = vmatpush.msra.mxu0 0.0
    %176 = vmatpush.msra.mxu0 0.0
    %177 = vmatpush.msra.mxu0 0.0
    %178 = vmatpush.msra.mxu0 %v20
    %179 = vmatpush.msra.mxu0 %v19
    %180 = vmatmul.f32.gmra.mxu0 %v162
    %v181 = vpop.f32.mrf.mxu0
    %v182 = vadd.f32 0.0, %v181
    %183 = vdwg.mxu0
    %v184 = vadd.f32 %v77, %v182
    %v185 = vxor.u32 %v184, 2147483648
    %v186 = vmul.f32 %v185, 1.442695
    %v187 = vpow.pop %v186
    %v188 = vadd.f32 %v187, 1.0
    %v189 = vrcp.pop %v188
    %v190 = vmul.f32 %v188, %v189
    %v191 = vsub.f32 1.0, %v190
    %v192 = vmul.f32 %v189, %v191
    %v193 = vadd.f32 %v189, %v192
    %vm194 = vweird.f32 %v188
    %vm195 = vweird.f32 %v189
    %vm196 = vmor %vm194, %vm195
    %v197 = vsel %vm196, %v189, %v193
    %v198 = vand.u32 2147483647, %v188
    %vm199 = vcmp.eq.f32.partialorder %v198, 8.507059e+37
    %v200 = vand.u32 %v188, 2147483648
    %v201 = vor.u32 1.1754944e-38, %v200
    %v202 = vsel %vm199, %v201, %v197
    %v203 = vmul.f32 1.0, %v202
    %v204 = vtanh.pop %v184
    %v205 = vmul.f32 %v203, %v152
    %207 = vrot.lane.b32.xlu0 %v204, 80
    %v208 = vpop.permute.xlu0 %207
    %v210 = vmul.f32 %v203, %v208
    %212 = vrot.lane.b32.xlu0 %v210, 16
    %v213 = vpop.permute.xlu0 %212
    %v215 = vadd.f32 %v205, %v213
    %v216 = vtanh.pop %v215
    %218 = vrot.lane.b32.xlu0 %v216, 16
    %v219 = vpop.permute.xlu0 %218
    %v221 = vmul.f32 %v203, %v219
    %223 = vrot.lane.b32.xlu0 %v221, 96
    %v224 = vpop.permute.xlu0 %223
    %v225 = vsel %vm97, %v224, 0
    %227 = vmatpush.msra.mxu0 0.0
    %228 = vmatpush.msra.mxu0 0.0
    %229 = vmatpush.msra.mxu0 0.0
    %230 = vmatpush.msra.mxu0 0.0
    %231 = vmatpush.msra.mxu0 0.0
    %232 = vmatpush.msra.mxu0 0.0
    %233 = vmatpush.msra.mxu0 0.0
    %234 = vmatpush.msra.mxu0 0.0
    %235 = vmatpush.msra.mxu0 0.0
    %236 = vmatpush.msra.mxu0 0.0
    %237 = vmatpush.msra.mxu0 0.0
    %238 = vmatpush.msra.mxu0 0.0
    %239 = vmatpush.msra.mxu0 0.0
    %240 = vmatpush.msra.mxu0 0.0
    %241 = vmatpush.msra.mxu0 %v20
    %242 = vmatpush.msra.mxu0 %v19
    %243 = vmatmul.f32.gmra.mxu0 %v225
    %v244 = vpop.f32.mrf.mxu0
    %v245 = vadd.f32 0.0, %v244
    %246 = vdwg.mxu0
    %v247 = vadd.f32 %v80, %v245
    %v248 = vxor.u32 %v247, 2147483648
    %v249 = vmul.f32 %v248, 1.442695
    %v250 = vpow.pop %v249
    %v251 = vadd.f32 %v250, 1.0
    %v252 = vrcp.pop %v251
    %v253 = vmul.f32 %v251, %v252
    %v254 = vsub.f32 1.0, %v253
    %v255 = vmul.f32 %v252, %v254
    %v256 = vadd.f32 %v252, %v255
    %vm257 = vweird.f32 %v251
    %vm258 = vweird.f32 %v252
    %vm259 = vmor %vm257, %vm258
    %v260 = vsel %vm259, %v252, %v256
    %v261 = vand.u32 2147483647, %v251
    %vm262 = vcmp.eq.f32.partialorder %v261, 8.507059e+37
    %v263 = vand.u32 %v251, 2147483648
    %v264 = vor.u32 1.1754944e-38, %v263
    %v265 = vsel %vm262, %v264, %v260
    %v266 = vmul.f32 1.0, %v265
    %v267 = vtanh.pop %v247
    %v268 = vmul.f32 %v266, %v215
    %270 = vrot.lane.b32.xlu0 %v267, 80
    %v271 = vpop.permute.xlu0 %270
    %v273 = vmul.f32 %v266, %v271
    %275 = vrot.lane.b32.xlu0 %v273, 16
    %v276 = vpop.permute.xlu0 %275
    %v278 = vadd.f32 %v268, %v276
    %v279 = vtanh.pop %v278
    %281 = vrot.lane.b32.xlu0 %v279, 16
    %v282 = vpop.permute.xlu0 %281
    %v284 = vmul.f32 %v266, %v282
    %286 = vrot.lane.b32.xlu0 %v284, 96
    %v287 = vpop.permute.xlu0 %286
    %v288 = vsel %vm97, %v287, 0
    %290 = vmatpush.msra.mxu0 0.0
    %291 = vmatpush.msra.mxu0 0.0
    %292 = vmatpush.msra.mxu0 0.0
    %293 = vmatpush.msra.mxu0 0.0
    %294 = vmatpush.msra.mxu0 0.0
    %295 = vmatpush.msra.mxu0 0.0
    %296 = vmatpush.msra.mxu0 0.0
    %297 = vmatpush.msra.mxu0 0.0
    %298 = vmatpush.msra.mxu0 0.0
    %299 = vmatpush.msra.mxu0 0.0
    %300 = vmatpush.msra.mxu0 0.0
    %301 = vmatpush.msra.mxu0 0.0
    %302 = vmatpush.msra.mxu0 0.0
    %303 = vmatpush.msra.mxu0 0.0
    %304 = vmatpush.msra.mxu0 %v20
    %305 = vmatpush.msra.mxu0 %v19
    %306 = vmatmul.f32.gmra.mxu0 %v288
    %v307 = vpop.f32.mrf.mxu0
    %v308 = vadd.f32 0.0, %v307
    %309 = vdwg.mxu0
    %v310 = vadd.f32 %v83, %v308
    %v311 = vxor.u32 %v310, 2147483648
    %v312 = vmul.f32 %v311, 1.442695
    %v313 = vpow.pop %v312
    %v314 = vadd.f32 %v313, 1.0
    %v315 = vrcp.pop %v314
    %v316 = vmul.f32 %v314, %v315
    %v317 = vsub.f32 1.0, %v316
    %v318 = vmul.f32 %v315, %v317
    %v319 = vadd.f32 %v315, %v318
    %vm320 = vweird.f32 %v314
    %vm321 = vweird.f32 %v315
    %vm322 = vmor %vm320, %vm321
    %v323 = vsel %vm322, %v315, %v319
    %v324 = vand.u32 2147483647, %v314
    %vm325 = vcmp.eq.f32.partialorder %v324, 8.507059e+37
    %v326 = vand.u32 %v314, 2147483648
    %v327 = vor.u32 1.1754944e-38, %v326
    %v328 = vsel %vm325, %v327, %v323
    %v329 = vmul.f32 1.0, %v328
    %v330 = vtanh.pop %v310
    %v331 = vmul.f32 %v329, %v278
    %333 = vrot.lane.b32.xlu0 %v330, 80
    %v334 = vpop.permute.xlu0 %333
    %v336 = vmul.f32 %v329, %v334
    %338 = vrot.lane.b32.xlu0 %v336, 16
    %v339 = vpop.permute.xlu0 %338
    %v341 = vadd.f32 %v331, %v339
    %v342 = vtanh.pop %v341
    %344 = vrot.lane.b32.xlu0 %v342, 16
    %v345 = vpop.permute.xlu0 %344
    %v347 = vmul.f32 %v329, %v345
    %349 = vrot.lane.b32.xlu0 %v347, 96
    %v350 = vpop.permute.xlu0 %349
    %v351 = vsel %vm97, %v350, 0
    %353 = vmatpush.msra.mxu0 0.0
    %354 = vmatpush.msra.mxu0 0.0
    %355 = vmatpush.msra.mxu0 0.0
    %356 = vmatpush.msra.mxu0 0.0
    %357 = vmatpush.msra.mxu0 0.0
    %358 = vmatpush.msra.mxu0 0.0
    %359 = vmatpush.msra.mxu0 0.0
    %360 = vmatpush.msra.mxu0 0.0
    %361 = vmatpush.msra.mxu0 0.0
    %362 = vmatpush.msra.mxu0 0.0
    %363 = vmatpush.msra.mxu0 0.0
    %364 = vmatpush.msra.mxu0 0.0
    %365 = vmatpush.msra.mxu0 0.0
    %366 = vmatpush.msra.mxu0 0.0
    %367 = vmatpush.msra.mxu0 %v20
    %368 = vmatpush.msra.mxu0 %v19
    %369 = vmatmul.f32.gmra.mxu0 %v351
    %v370 = vpop.f32.mrf.mxu0
    %v371 = vadd.f32 0.0, %v370
    %372 = vdwg.mxu0
    %v373 = vadd.f32 %v86, %v371
    %v374 = vxor.u32 %v373, 2147483648
    %v375 = vmul.f32 %v374, 1.442695
    %v376 = vpow.pop %v375
    %v377 = vadd.f32 %v376, 1.0
    %v378 = vrcp.pop %v377
    %v379 = vmul.f32 %v377, %v378
    %v380 = vsub.f32 1.0, %v379
    %v381 = vmul.f32 %v378, %v380
    %v382 = vadd.f32 %v378, %v381
    %vm383 = vweird.f32 %v377
    %vm384 = vweird.f32 %v378
    %vm385 = vmor %vm383, %vm384
    %v386 = vsel %vm385, %v378, %v382
    %v387 = vand.u32 2147483647, %v377
    %vm388 = vcmp.eq.f32.partialorder %v387, 8.507059e+37
    %v389 = vand.u32 %v377, 2147483648
    %v390 = vor.u32 1.1754944e-38, %v389
    %v391 = vsel %vm388, %v390, %v386
    %v392 = vmul.f32 1.0, %v391
    %v393 = vtanh.pop %v373
    %v394 = vmul.f32 %v392, %v341
    %396 = vrot.lane.b32.xlu0 %v393, 80
    %v397 = vpop.permute.xlu0 %396
    %v399 = vmul.f32 %v392, %v397
    %401 = vrot.lane.b32.xlu0 %v399, 16
    %v402 = vpop.permute.xlu0 %401
    %v404 = vadd.f32 %v394, %v402
    %v405 = vtanh.pop %v404
    %407 = vrot.lane.b32.xlu0 %v405, 16
    %v408 = vpop.permute.xlu0 %407
    %v410 = vmul.f32 %v392, %v408
    %412 = vrot.lane.b32.xlu0 %v410, 96
    %v413 = vpop.permute.xlu0 %412
    %v414 = vsel %vm97, %v413, 0
    %416 = vmatpush.msra.mxu0 0.0
    %417 = vmatpush.msra.mxu0 0.0
    %418 = vmatpush.msra.mxu0 0.0
    %419 = vmatpush.msra.mxu0 0.0
    %420 = vmatpush.msra.mxu0 0.0
    %421 = vmatpush.msra.mxu0 0.0
    %422 = vmatpush.msra.mxu0 0.0
    %423 = vmatpush.msra.mxu0 0.0
    %424 = vmatpush.msra.mxu0 0.0
    %425 = vmatpush.msra.mxu0 0.0
    %426 = vmatpush.msra.mxu0 0.0
    %427 = vmatpush.msra.mxu0 0.0
    %428 = vmatpush.msra.mxu0 0.0
    %429 = vmatpush.msra.mxu0 0.0
    %430 = vmatpush.msra.mxu0 %v20
    %431 = vmatpush.msra.mxu0 %v19
    %432 = vmatmul.f32.gmra.mxu0 %v414
    %v433 = vpop.f32.mrf.mxu0
    %v434 = vadd.f32 0.0, %v433
    %435 = vdwg.mxu0
    %v436 = vadd.f32 %v89, %v434
    %v437 = vxor.u32 %v436, 2147483648
    %v438 = vmul.f32 %v437, 1.442695
    %v439 = vpow.pop %v438
    %v440 = vadd.f32 %v439, 1.0
    %v441 = vrcp.pop %v440
    %v442 = vmul.f32 %v440, %v441
    %v443 = vsub.f32 1.0, %v442
    %v444 = vmul.f32 %v441, %v443
    %v445 = vadd.f32 %v441, %v444
    %vm446 = vweird.f32 %v440
    %vm447 = vweird.f32 %v441
    %vm448 = vmor %vm446, %vm447
    %v449 = vsel %vm448, %v441, %v445
    %v450 = vand.u32 2147483647, %v440
    %vm451 = vcmp.eq.f32.partialorder %v450, 8.507059e+37
    %v452 = vand.u32 %v440, 2147483648
    %v453 = vor.u32 1.1754944e-38, %v452
    %v454 = vsel %vm451, %v453, %v449
    %v455 = vmul.f32 1.0, %v454
    %v456 = vtanh.pop %v436
    %v457 = vmul.f32 %v455, %v404
    %459 = vrot.lane.b32.xlu0 %v456, 80
    %v460 = vpop.permute.xlu0 %459
    %v462 = vmul.f32 %v455, %v460
    %464 = vrot.lane.b32.xlu0 %v462, 16
    %v465 = vpop.permute.xlu0 %464
    %v467 = vadd.f32 %v457, %v465
    %v468 = vtanh.pop %v467
    %470 = vrot.lane.b32.xlu0 %v468, 16
    %v471 = vpop.permute.xlu0 %470
    %v473 = vmul.f32 %v455, %v471
    %475 = vrot.lane.b32.xlu0 %v473, 96
    %v476 = vpop.permute.xlu0 %475
    %v477 = vsel %vm97, %v476, 0
    %479 = vmatpush.msra.mxu0 0.0
    %480 = vmatpush.msra.mxu0 0.0
    %481 = vmatpush.msra.mxu0 0.0
    %482 = vmatpush.msra.mxu0 0.0
    %483 = vmatpush.msra.mxu0 0.0
    %484 = vmatpush.msra.mxu0 0.0
    %485 = vmatpush.msra.mxu0 0.0
    %486 = vmatpush.msra.mxu0 0.0
    %487 = vmatpush.msra.mxu0 0.0
    %488 = vmatpush.msra.mxu0 0.0
    %489 = vmatpush.msra.mxu0 0.0
    %490 = vmatpush.msra.mxu0 0.0
    %491 = vmatpush.msra.mxu0 0.0
    %492 = vmatpush.msra.mxu0 0.0
    %493 = vmatpush.msra.mxu0 %v20
    %494 = vmatpush.msra.mxu0 %v19
    %495 = vmatmul.f32.gmra.mxu0 %v477
    %v496 = vpop.f32.mrf.mxu0
    %v497 = vadd.f32 0.0, %v496
    %498 = vdwg.mxu0
    %v499 = vadd.f32 %v92, %v497
    %v500 = vxor.u32 %v499, 2147483648
    %v501 = vmul.f32 %v500, 1.442695
    %v502 = vpow.pop %v501
    %v503 = vadd.f32 %v502, 1.0
    %v504 = vrcp.pop %v503
    %v505 = vmul.f32 %v503, %v504
    %v506 = vsub.f32 1.0, %v505
    %v507 = vmul.f32 %v504, %v506
    %v508 = vadd.f32 %v504, %v507
    %vm509 = vweird.f32 %v503
    %vm510 = vweird.f32 %v504
    %vm511 = vmor %vm509, %vm510
    %v512 = vsel %vm511, %v504, %v508
    %v513 = vand.u32 2147483647, %v503
    %vm514 = vcmp.eq.f32.partialorder %v513, 8.507059e+37
    %v515 = vand.u32 %v503, 2147483648
    %v516 = vor.u32 1.1754944e-38, %v515
    %v517 = vsel %vm514, %v516, %v512
    %v518 = vmul.f32 1.0, %v517
    %v519 = vtanh.pop %v499
    %v520 = vmul.f32 %v518, %v467
    %522 = vrot.lane.b32.xlu0 %v519, 80
    %v523 = vpop.permute.xlu0 %522
    %v525 = vmul.f32 %v518, %v523
    %527 = vrot.lane.b32.xlu0 %v525, 16
    %v528 = vpop.permute.xlu0 %527
    %v530 = vadd.f32 %v520, %v528
    %v531 = vtanh.pop %v530
    %533 = vrot.lane.b32.xlu0 %v531, 16
    %v534 = vpop.permute.xlu0 %533
    %v536 = vmul.f32 %v518, %v534
    %538 = vrot.lane.b32.xlu0 %v536, 96
    %v539 = vpop.permute.xlu0 %538
    %v540 = vsel %vm97, %v539, 0
    %542 = vmatpush.msra.mxu0 0.0
    %543 = vmatpush.msra.mxu0 0.0
    %544 = vmatpush.msra.mxu0 0.0
    %545 = vmatpush.msra.mxu0 0.0
    %546 = vmatpush.msra.mxu0 0.0
    %547 = vmatpush.msra.mxu0 0.0
    %548 = vmatpush.msra.mxu0 0.0
    %549 = vmatpush.msra.mxu0 0.0
    %550 = vmatpush.msra.mxu0 0.0
    %551 = vmatpush.msra.mxu0 0.0
    %552 = vmatpush.msra.mxu0 0.0
    %553 = vmatpush.msra.mxu0 0.0
    %554 = vmatpush.msra.mxu0 0.0
    %555 = vmatpush.msra.mxu0 0.0
    %556 = vmatpush.msra.mxu0 %v20
    %557 = vmatpush.msra.mxu0 %v19
    %558 = vmatmul.f32.gmra.mxu0 %v540
    %v559 = vpop.f32.mrf.mxu0
    %v560 = vadd.f32 0.0, %v559
    %561 = vdwg.mxu0
    %v562 = vadd.f32 %v95, %v560
    %v563 = vxor.u32 %v562, 2147483648
    %v564 = vmul.f32 %v563, 1.442695
    %v565 = vpow.pop %v564
    %v566 = vadd.f32 %v565, 1.0
    %v567 = vrcp.pop %v566
    %v568 = vmul.f32 %v566, %v567
    %v569 = vsub.f32 1.0, %v568
    %v570 = vmul.f32 %v567, %v569
    %v571 = vadd.f32 %v567, %v570
    %vm572 = vweird.f32 %v566
    %vm573 = vweird.f32 %v567
    %vm574 = vmor %vm572, %vm573
    %v575 = vsel %vm574, %v567, %v571
    %v576 = vand.u32 2147483647, %v566
    %vm577 = vcmp.eq.f32.partialorder %v576, 8.507059e+37
    %v578 = vand.u32 %v566, 2147483648
    %v579 = vor.u32 1.1754944e-38, %v578
    %v580 = vsel %vm577, %v579, %v575
    %v581 = vmul.f32 1.0, %v580
    %v582 = vtanh.pop %v562
    %v583 = vmul.f32 %v581, %v530
    %585 = vrot.lane.b32.xlu0 %v582, 80
    %v586 = vpop.permute.xlu0 %585
    %v588 = vmul.f32 %v581, %v586
    %590 = vrot.lane.b32.xlu0 %v588, 16
    %v591 = vpop.permute.xlu0 %590
    %v593 = vadd.f32 %v583, %v591
    %v594 = vtanh.pop %v593
    %596 = vrot.lane.b32.xlu0 %v594, 16
    %v597 = vpop.permute.xlu0 %596
    %v599 = vmul.f32 %v581, %v597
    %601 = vrot.lane.b32.xlu0 %v599, 96
    %v602 = vpop.permute.xlu0 %601
    %v604 = vrot.slane %v599, 4
    %605 = vrot.lane.b32.xlu0 %v604, 112
    %v606 = vpop.permute.xlu0 %605
    %v608 = vsel %vm97, %v602, %v606
    %v610 = vrot.slane %v608, 6
    %v612 = vsub.f32 %v608, %v610
    %v613 = vrot.slane %v608, 2
    %v615 = vmul.f32 %v608, %v613
    %616 = vrot.lane.b32.xlu0 %v613, 32
    %v617 = vpop.permute.xlu0 %616
    %v620 = vrot.slane %v612, 2
    %621 = vrot.lane.b32.xlu0 %v620, 64
    %v622 = vpop.permute.xlu0 %621
    %625 = vrot.lane.b32.xlu0 %v615, 96
    %v626 = vpop.permute.xlu0 %625
    %vm628 = vcmask 261120
    %v629 = vsel %vm628, %v608, %v617
    %vm630 = vcmask 523264
    %v631 = vsel %vm630, %v629, %v622
    %vm632 = vcmask 785408
    %v633 = vsel %vm632, %v631, %v626
    %v634 = vld [vmem:[%s3] sm:$0x1]
    %v635 = vld [vmem:[%s3 + $0x1] sm:$0x1]
    %vm636 = vcmask 1041408
    %v637 = vsel %vm636, %v633, 0.0
    %638 = vadd.xlane.f32.xlu0 %v637
    %v639 = vpop.xlane.xlu0 %638
    %v640 = vrcp.pop 128.0
    %v641 = vmul.f32 128.0, %v640
    %v642 = vsub.f32 1.0, %v641
    %v643 = vmul.f32 %v640, %v642
    %v644 = vadd.f32 %v640, %v643
    %vm645 = vweird.f32 %v640
    %v646 = vsel %vm645, %v640, %v644
    %v647 = vmul.f32 %v639, %v646
    %v648 = vsub.f32 %v633, %v647
    %v649 = vmul.f32 %v648, %v648
    %v650 = vsel %vm636, %v649, 0.0
    %651 = vadd.xlane.f32.xlu0 %v650
    %v652 = vpop.xlane.xlu0 %651
    %v653 = vmul.f32 %v652, 0.007874016
    %v654 = vrsqrt.pop %v653
    %v655 = vmul.f32 %v654, %v653
    %v656 = vmul.f32 %v655, %v654
    %v657 = vmul.f32 0.5, %v656
    %v658 = vsub.f32 1.5, %v657
    %v659 = vmul.f32 %v654, %v658
    %v660 = vmul.f32 %v653, %v659
    %vm661 = vcmp.eq.f32.partialorder %v653, inf
    %v662 = vsel %vm661, %v653, %v660
    %vm663 = vcmp.eq.f32.partialorder %v653, 0.0
    %v664 = vand.u32 %v653, 2147483648
    %v665 = vsel %vm663, %v664, %v662
    %v666 = vadd.f32 %v665, 1e-06
    %v667 = vrcp.pop %v666
    %v668 = vmul.f32 %v666, %v667
    %v669 = vsub.f32 1.0, %v668
    %v670 = vmul.f32 %v667, %v669
    %v671 = vadd.f32 %v667, %v670
    %vm672 = vweird.f32 %v666
    %vm673 = vweird.f32 %v667
    %vm674 = vmor %vm672, %vm673
    %v675 = vsel %vm674, %v667, %v671
    %v676 = vand.u32 2147483647, %v666
    %vm677 = vcmp.eq.f32.partialorder %v676, 8.507059e+37
    %v678 = vand.u32 %v666, 2147483648
    %v679 = vor.u32 1.1754944e-38, %v678
    %v680 = vsel %vm677, %v679, %v675
    %v681 = vmul.f32 %v648, %v680
    %v682 = vperm.slane %v634, 0
    %v683 = vmul.f32 %v681, %v682
    %v684 = vperm.slane %v635, 0
    %v685 = vadd.f32 %v683, %v684
    %v686 = vld [vmem:[%s2] sm:$0xff]
    %v687 = vld [vmem:[%s2 + $0x8] sm:$0xff]
    %v688 = vld [vmem:[%s2 + $0x10] sm:$0xff]
    %v689 = vld [vmem:[%s2 + $0x18] sm:$0xff]
    %v690 = vld [vmem:[%s2 + $0x20] sm:$0xff]
    %v691 = vld [vmem:[%s2 + $0x28] sm:$0xff]
    %v692 = vld [vmem:[%s2 + $0x30] sm:$0xff]
    %v693 = vld [vmem:[%s2 + $0x38] sm:$0xff]
    %v694 = vld [vmem:[%s2 + $0x40] sm:$0xff]
    %v695 = vld [vmem:[%s2 + $0x48] sm:$0xff]
    %v696 = vld [vmem:[%s2 + $0x50] sm:$0xff]
    %v697 = vld [vmem:[%s2 + $0x58] sm:$0xff]
    %v698 = vld [vmem:[%s2 + $0x60] sm:$0xff]
    %v699 = vld [vmem:[%s2 + $0x68] sm:$0xff]
    %v700 = vld [vmem:[%s2 + $0x70] sm:$0xff]
    %v701 = vld [vmem:[%s2 + $0x78] sm:$0xff]
    %v702 = vld [vmem:[%s2 + $0x80] sm:$0xff]
    %v703 = vld [vmem:[%s2 + $0x88] sm:$0xff]
    %v704 = vld [vmem:[%s2 + $0x90] sm:$0xff]
    %v705 = vld [vmem:[%s2 + $0x98] sm:$0xff]
    %v706 = vld [vmem:[%s2 + $0xa0] sm:$0xff]
    %v707 = vld [vmem:[%s2 + $0xa8] sm:$0xff]
    %v708 = vld [vmem:[%s2 + $0xb0] sm:$0xff]
    %v709 = vld [vmem:[%s2 + $0xb8] sm:$0xff]
    %v710 = vld [vmem:[%s3 + $0x3] sm:$0x1]
    %v711 = vperm.slane %v710, 0
    %712 = vmatpush.msra.mxu0 %v701
    %713 = vmatpush.msra.mxu0 %v700
    %714 = vmatpush.msra.mxu0 %v699
    %715 = vmatpush.msra.mxu0 %v698
    %716 = vmatpush.msra.mxu0 %v697
    %717 = vmatpush.msra.mxu0 %v696
    %718 = vmatpush.msra.mxu0 %v695
    %719 = vmatpush.msra.mxu0 %v694
    %720 = vmatpush.msra.mxu0 %v693
    %721 = vmatpush.msra.mxu0 %v692
    %722 = vmatpush.msra.mxu0 %v691
    %723 = vmatpush.msra.mxu0 %v690
    %724 = vmatpush.msra.mxu0 %v689
    %725 = vmatpush.msra.mxu0 %v688
    %726 = vmatpush.msra.mxu0 %v687
    %727 = vmatpush.msra.mxu0 %v686
    %728 = vmatmul.f32.gmra.mxu0 %v685
    %v729 = vpop.f32.mrf.mxu0
    %v730 = vadd.f32 %v711, %v729
    %731 = vdwg.mxu0
    %v732 = vmax.f32 %v730, 0.0
    %v733 = vld [vmem:[%s3 + $0x4] sm:$0x1]
    %v734 = vld [vmem:[%s3 + $0x5] sm:$0x1]
    %vm735 = vcmask 254976
    %v736 = vsel %vm735, %v732, 0.0
    %737 = vadd.xlane.f32.xlu0 %v736
    %v738 = vpop.xlane.xlu0 %737
    %v739 = vrcp.pop 32.0
    %v740 = vmul.f32 32.0, %v739
    %v741 = vsub.f32 1.0, %v740
    %v742 = vmul.f32 %v739, %v741
    %v743 = vadd.f32 %v739, %v742
    %vm744 = vweird.f32 %v739
    %v745 = vsel %vm744, %v739, %v743
    %v746 = vmul.f32 %v738, %v745
    %v747 = vsub.f32 %v732, %v746
    %v748 = vmul.f32 %v747, %v747
    %v749 = vsel %vm735, %v748, 0.0
    %750 = vadd.xlane.f32.xlu0 %v749
    %v751 = vpop.xlane.xlu0 %750
    %v752 = vmul.f32 %v751, 0.032258064
    %v753 = vrsqrt.pop %v752
    %v754 = vmul.f32 %v753, %v752
    %v755 = vmul.f32 %v754, %v753
    %v756 = vmul.f32 0.5, %v755
    %v757 = vsub.f32 1.5, %v756
    %v758 = vmul.f32 %v753, %v757
    %v759 = vmul.f32 %v752, %v758
    %vm760 = vcmp.eq.f32.partialorder %v752, inf
    %v761 = vsel %vm760, %v752, %v759
    %vm762 = vcmp.eq.f32.partialorder %v752, 0.0
    %v763 = vand.u32 %v752, 2147483648
    %v764 = vsel %vm762, %v763, %v761
    %v765 = vadd.f32 %v764, 1e-06
    %v766 = vrcp.pop %v765
    %v767 = vmul.f32 %v765, %v766
    %v768 = vsub.f32 1.0, %v767
    %v769 = vmul.f32 %v766, %v768
    %v770 = vadd.f32 %v766, %v769
    %vm771 = vweird.f32 %v765
    %vm772 = vweird.f32 %v766
    %vm773 = vmor %vm771, %vm772
    %v774 = vsel %vm773, %v766, %v770
    %v775 = vand.u32 2147483647, %v765
    %vm776 = vcmp.eq.f32.partialorder %v775, 8.507059e+37
    %v777 = vand.u32 %v765, 2147483648
    %v778 = vor.u32 1.1754944e-38, %v777
    %v779 = vsel %vm776, %v778, %v774
    %v780 = vmul.f32 %v747, %v779
    %v781 = vperm.slane %v733, 0
    %v782 = vmul.f32 %v780, %v781
    %v783 = vperm.slane %v734, 0
    %v784 = vadd.f32 %v782, %v783
    %v785 = vld [vmem:[%s3 + $0x6] sm:$0x1]
    %v786 = vperm.slane %v785, 0
    %v788 = vsel %vm628, %v784, 0
    %790 = vmatpush.msra.mxu0 0.0
    %791 = vmatpush.msra.mxu0 0.0
    %792 = vmatpush.msra.mxu0 0.0
    %793 = vmatpush.msra.mxu0 0.0
    %794 = vmatpush.msra.mxu0 0.0
    %795 = vmatpush.msra.mxu0 0.0
    %796 = vmatpush.msra.mxu0 0.0
    %797 = vmatpush.msra.mxu0 0.0
    %798 = vmatpush.msra.mxu0 0.0
    %799 = vmatpush.msra.mxu0 0.0
    %800 = vmatpush.msra.mxu0 0.0
    %801 = vmatpush.msra.mxu0 0.0
    %802 = vmatpush.msra.mxu0 %v705
    %803 = vmatpush.msra.mxu0 %v704
    %804 = vmatpush.msra.mxu0 %v703
    %805 = vmatpush.msra.mxu0 %v702
    %806 = vmatmul.f32.gmra.mxu0 %v788
    %v807 = vpop.f32.mrf.mxu0
    %v808 = vadd.f32 %v786, %v807
    %809 = vdwg.mxu0
    %v810 = vmax.f32 %v808, 0.0
    %v811 = vld [vmem:[%s3 + $0x7] sm:$0x1]
    %v812 = vld [vmem:[%s3 + $0x8] sm:$0x1]
    %v813 = vsel %vm735, %v810, 0.0
    %814 = vadd.xlane.f32.xlu0 %v813
    %v815 = vpop.xlane.xlu0 %814
    %v816 = vmul.f32 %v815, %v745
    %v817 = vsub.f32 %v810, %v816
    %v818 = vmul.f32 %v817, %v817
    %v819 = vsel %vm735, %v818, 0.0
    %820 = vadd.xlane.f32.xlu0 %v819
    %v821 = vpop.xlane.xlu0 %820
    %v822 = vmul.f32 %v821, 0.032258064
    %v823 = vrsqrt.pop %v822
    %v824 = vmul.f32 %v823, %v822
    %v825 = vmul.f32 %v824, %v823
    %v826 = vmul.f32 0.5, %v825
    %v827 = vsub.f32 1.5, %v826
    %v828 = vmul.f32 %v823, %v827
    %v829 = vmul.f32 %v822, %v828
    %vm830 = vcmp.eq.f32.partialorder %v822, inf
    %v831 = vsel %vm830, %v822, %v829
    %vm832 = vcmp.eq.f32.partialorder %v822, 0.0
    %v833 = vand.u32 %v822, 2147483648
    %v834 = vsel %vm832, %v833, %v831
    %v835 = vadd.f32 %v834, 1e-06
    %v836 = vrcp.pop %v835
    %v837 = vmul.f32 %v835, %v836
    %v838 = vsub.f32 1.0, %v837
    %v839 = vmul.f32 %v836, %v838
    %v840 = vadd.f32 %v836, %v839
    %vm841 = vweird.f32 %v835
    %vm842 = vweird.f32 %v836
    %vm843 = vmor %vm841, %vm842
    %v844 = vsel %vm843, %v836, %v840
    %v845 = vand.u32 2147483647, %v835
    %vm846 = vcmp.eq.f32.partialorder %v845, 8.507059e+37
    %v847 = vand.u32 %v835, 2147483648
    %v848 = vor.u32 1.1754944e-38, %v847
    %v849 = vsel %vm846, %v848, %v844
    %v850 = vmul.f32 %v817, %v849
    %v851 = vperm.slane %v811, 0
    %v852 = vmul.f32 %v850, %v851
    %v853 = vperm.slane %v812, 0
    %v854 = vadd.f32 %v852, %v853
    %v855 = vld [vmem:[%s3 + $0x9] sm:$0x1]
    %v856 = vperm.slane %v855, 0
    %v858 = vsel %vm628, %v854, 0
    %860 = vmatpush.msra.mxu0 0.0
    %861 = vmatpush.msra.mxu0 0.0
    %862 = vmatpush.msra.mxu0 0.0
    %863 = vmatpush.msra.mxu0 0.0
    %864 = vmatpush.msra.mxu0 0.0
    %865 = vmatpush.msra.mxu0 0.0
    %866 = vmatpush.msra.mxu0 0.0
    %867 = vmatpush.msra.mxu0 0.0
    %868 = vmatpush.msra.mxu0 0.0
    %869 = vmatpush.msra.mxu0 0.0
    %870 = vmatpush.msra.mxu0 0.0
    %871 = vmatpush.msra.mxu0 0.0
    %872 = vmatpush.msra.mxu0 %v709
    %873 = vmatpush.msra.mxu0 %v708
    %874 = vmatpush.msra.mxu0 %v707
    %875 = vmatpush.msra.mxu0 %v706
    %876 = vmatmul.f32.gmra.mxu0 %v858
    %v877 = vpop.f32.mrf.mxu0
    %v878 = vadd.f32 %v856, %v877
    %879 = vdwg.mxu0
    %vm880 = vcmask 17408
    %881 = vst.msk [vmem:[#allocation2] sm:$0x3] %vm880, %v878
    // Predicated region
    $region18: #{snli_forward.1} parent=1 // pred_check
      _
    $region19: #{snli_forward.1} parent=1 // pred_check_branch
      %883 = sbr.rel (0) target = $region21
    $region20: #{snli_forward.1} parent=1 // pred_region
      %885 = vsyncadd [#allocation3], 0
      %s887 = sshll.u32 [#allocation2], 4
      %s888 = int_to_ptr.vmem [resolvable:$true] %s887
      %s889 = sshll.u32 %s4, 4
      %s890 = int_to_ptr.hbm [resolvable:$true] %s889
      %892 = dma.vmem_to_hbm [thread:$0]  %s888, 32, %s890, [#allocation3]
    $region21: #{snli_forward.1} parent=1 // pred_fallthru
      _
    // Predicated region
    $region22: #{snli_forward.1} parent=1 // pred_check
      _
    $region23: #{snli_forward.1} parent=1 // pred_check_branch
      %894 = sbr.rel (0) target = $region25
    $region24: #{snli_forward.1} parent=1 // pred_region
      %896 = dma.done [#allocation3], 32
    $region25: #{snli_forward.1} parent=1 // pred_fallthru
      _
    %897 = vsyncpa [#allocation3], 1

</llo_original>
